<compile_context>
chip_gen: v5e
topology: v5e:2x2
jax: 0.10.0
libtpu: 0.0.40
codegen_flags: <defaults>
</compile_context>

<pallas_src>
import jax
import jax.numpy as jnp
from jax.experimental import pallas as pl
from jax.experimental.pallas import tpu as pltpu


# --------------------------------------------------------------------------- #
# Hardware budget helpers
# --------------------------------------------------------------------------- #
def _vmem_capacity_bytes():
    # v5e/v6e: 128 MiB, v7x: 64 MiB per TensorCore.  Conservative fallback.
    try:
        info = pltpu.get_tpu_info()
        for name in ("vmem_capacity_bytes", "vmem_bytes", "vmem_size_bytes"):
            cap = getattr(info, name, None)
            if cap:
                return int(cap)
    except Exception:
        pass
    return 64 << 20  # safe on every generation


def _budgets():
    cap = _vmem_capacity_bytes()
    # Leave headroom for compiler-internal scratch; never request physical max.
    vmem_budget = min(int(cap * 3 // 4), cap - (8 << 20))
    vmem_budget = max(vmem_budget, 32 << 20)
    # 2x(in) + 2x(out) double buffers must fit with margin.
    max_block_bytes = max(1 << 20, vmem_budget // 5)
    # Sweet-spot target: ~8 MiB on 64 MiB chips (v7x), ~16 MiB on 128 MiB chips.
    target_block_bytes = min(max_block_bytes,
                             (8 << 20) if cap <= (64 << 20) else (16 << 20))
    return vmem_budget, max_block_bytes, target_block_bytes


# --------------------------------------------------------------------------- #
# Single-pass kernel (whole (C, HW) slab per image fits in a block)
# --------------------------------------------------------------------------- #
def _make_ca_kernel(inv_hw):
    def kernel(x_ref, w1_ref, w2_ref, b1_ref, b2_ref, o_ref):
        # x_ref block: (bt, C, HW) in the caller's dtype.
        # Pool: accumulate in f32 without materializing an f32 copy of the block.
        pooled = jnp.sum(x_ref[...], axis=-1, dtype=jnp.float32) * inv_hw  # (bt, C)

        # 1x1 conv (C -> mid) + bias + ReLU as a VPU broadcast-multiply-reduce.
        h = jnp.sum(pooled[:, None, :] * w1_ref[...][None, :, :], axis=-1)  # (bt, mid)
        h = jnp.maximum(h + b1_ref[...], 0.0)

        # 1x1 conv (mid -> C) + bias + sigmoid.
        logits = jnp.sum(h[:, None, :] * w2_ref[...][None, :, :], axis=-1)  # (bt, C)
        att = jax.nn.sigmoid(logits + b2_ref[...])                          # (bt, C)

        # Channel-wise scale; re-read x_ref (cheap VMEM read, no live f32 copy).
        o_ref[...] = (x_ref[...] * att.astype(x_ref.dtype)[:, :, None]).astype(o_ref.dtype)

    return kernel


# --------------------------------------------------------------------------- #
# HW-tiled fallback for large images: pool+SE pass, then scale pass.
# --------------------------------------------------------------------------- #
def _ca_layer_hw_tiled(x, w1f, w2f, b1f, b2f, H, W, hw_tile, vmem_budget, param_bytes):
    B, C, HW = x.shape
    mid = w1f.shape[0]
    dt = x.dtype
    itemsize = jnp.dtype(dt).itemsize
    n_hw = pl.cdiv(HW, hw_tile)
    needs_mask = (HW % hw_tile) != 0
    inv_hw = 1.0 / HW
    block_bytes = C * hw_tile * itemsize

    # ---- Pass 1: pooled sums + squeeze-excite -> attention (B, C) f32 ---- #
    def pool_se_kernel(x_ref, w1_ref, w2_ref, b1_ref, b2_ref, att_ref, acc_ref):
        b = pl.program_id(0)
        hw = pl.program_id(1)

        @pl.when(hw == 0)
        def _():
            acc_ref[...] = jnp.zeros_like(acc_ref)

        xv = x_ref[...]                                          # (1, C, hw_tile)
        if needs_mask:
            lane = jax.lax.broadcasted_iota(jnp.int32, xv.shape, 2)
            xv = jnp.where(hw * hw_tile + lane < HW, xv, jnp.zeros((), xv.dtype))
        acc_ref[...] += jnp.sum(xv, axis=-1, dtype=jnp.float32)  # (1, C)

        @pl.when(hw == pl.num_programs(1) - 1)
        def _():
            pooled = acc_ref[...] * inv_hw                                        # (1, C)
            h = jnp.sum(pooled[:, None, :] * w1_ref[...][None, :, :], axis=-1)    # (1, mid)
            h = jnp.maximum(h + b1_ref[...], 0.0)
            logits = jnp.sum(h[:, None, :] * w2_ref[...][None, :, :], axis=-1)    # (1, C)
            att_ref[pl.ds(b, 1), :] = jax.nn.sigmoid(logits + b2_ref[...])

    att = pl.pallas_call(
        pool_se_kernel,
        out_shape=jax.ShapeDtypeStruct((B, C), jnp.float32),
        grid_spec=pltpu.PrefetchScalarGridSpec(
            num_scalar_prefetch=0,
            grid=(B, n_hw),
            in_specs=[
                pl.BlockSpec((1, C, hw_tile), lambda b, hw: (b, 0, hw)),
                pl.BlockSpec((mid, C), lambda b, hw: (0, 0)),
                pl.BlockSpec((C, mid), lambda b, hw: (0, 0)),
                pl.BlockSpec((1, mid), lambda b, hw: (0, 0)),
                pl.BlockSpec((1, C), lambda b, hw: (0, 0)),
            ],
            # Full-array output block: resident in VMEM for the whole grid
            # (avoids sub-8-sublane output blocks); written back once at the end.
            out_specs=pl.BlockSpec((B, C), lambda b, hw: (0, 0)),
            scratch_shapes=[pltpu.VMEM((1, C), jnp.float32)],
        ),
        compiler_params=pltpu.CompilerParams(
            dimension_semantics=("arbitrary", "arbitrary"),
            vmem_limit_bytes=int(min(vmem_budget,
                                     max(32 << 20,
                                         2 * block_bytes + B * C * 4
                                         + param_bytes + (2 << 20)))),
        ),
    )(x, w1f, w2f, b1f, b2f)

    # ---- Pass 2: channel-wise scale, streamed over HW tiles ---- #
    def scale_kernel(x_ref, att_ref, o_ref):
        b = pl.program_id(0)
        a = att_ref[pl.ds(b, 1), :]                              # (1, C) f32, resident
        o_ref[...] = (x_ref[...] * a.astype(x_ref.dtype)[:, :, None]).astype(o_ref.dtype)

    out = pl.pallas_call(
        scale_kernel,
        out_shape=jax.ShapeDtypeStruct((B, C, HW), dt),
        grid_spec=pltpu.PrefetchScalarGridSpec(
            num_scalar_prefetch=0,
            grid=(B, n_hw),
            in_specs=[
                pl.BlockSpec((1, C, hw_tile), lambda b, hw: (b, 0, hw)),
                pl.BlockSpec((B, C), lambda b, hw: (0, 0)),
            ],
            out_specs=pl.BlockSpec((1, C, hw_tile), lambda b, hw: (b, 0, hw)),
        ),
        compiler_params=pltpu.CompilerParams(
            dimension_semantics=("parallel", "parallel"),
            vmem_limit_bytes=int(min(vmem_budget,
                                     max(32 << 20,
                                         4 * block_bytes + B * C * 4 + (2 << 20)))),
        ),
    )(x, att)

    return out.reshape(B, C, H, W)


# --------------------------------------------------------------------------- #
# Public wrapper
# --------------------------------------------------------------------------- #
def ca_layer(x_nchw, w1, b1, w2, b2, *, _force_hw_tile=None, _force_bt=None):
    """Channel attention: x * sigmoid(W2 @ relu(W1 @ avgpool(x) + b1) + b2).

    x_nchw: (B, C, H, W) (any float dtype; output matches it).
    w1: (mid, C), b1: (mid,), w2: (C, mid), b2: (C,)  -- 1x1-conv weights.
    """
    B, C, H, W = x_nchw.shape
    mid = w1.shape[0]
    HW = H * W
    dt = x_nchw.dtype
    itemsize = jnp.dtype(dt).itemsize

    # Metadata-only reshape; no pad / slice HBM passes.
    x = x_nchw.reshape(B, C, HW)

    w1f = w1.astype(jnp.float32)                               # (mid, C)
    w2f = w2.astype(jnp.float32)                               # (C, mid)
    b1f = b1.reshape(1, mid).astype(jnp.float32)               # separate, lane-aligned
    b2f = b2.reshape(1, C).astype(jnp.float32)
    param_bytes = (w1f.size + w2f.size + b1f.size + b2f.size) * 4

    vmem_budget, max_block_bytes, target_block_bytes = _budgets()
    per_image_bytes = C * HW * itemsize

    # Large-image path: one image's (C, HW) slab doesn't fit the block budget
    # (plus temps and 4x buffering) -> tile the HW axis with two streaming passes.
    if _force_hw_tile is not None or per_image_bytes > max_block_bytes:
        if _force_hw_tile is not None:
            hw_tile = int(_force_hw_tile)
        else:
            hw_tile = max(128, (target_block_bytes // (C * 128 * itemsize)) * 128)
        hw_tile = min(hw_tile, pl.cdiv(HW, 128) * 128)
        return _ca_layer_hw_tiled(x, w1f, w2f, b1f, b2f, H, W, hw_tile,
                                  vmem_budget, param_bytes)

    # --- Batch-tile selection (decoupled from B's factorization) --- #
    bt = max(1, min(B, target_block_bytes // max(1, per_image_bytes)))
    if _force_bt is not None:
        bt = int(_force_bt)
    else:
        # Prefer >= 4 grid steps (DMA overlap + v7x megacore) when blocks >= 1 MiB.
        if B >= 2:
            desired = 4 if B >= 4 else 2
            bt_small = pl.cdiv(B, desired)
            if pl.cdiv(B, bt) < desired and bt_small * per_image_bytes >= (1 << 20):
                bt = min(bt, bt_small)
        # v7x megacore: prefer an even step count (balanced split across 2 TCs),
        # as long as blocks stay >= 1 MiB.
        if pl.cdiv(B, bt) > 1 and pl.cdiv(B, bt) % 2 == 1:
            for cand in range(bt, 0, -1):
                if cand * per_image_bytes < (1 << 20):
                    break
                if pl.cdiv(B, cand) % 2 == 0:
                    bt = cand
                    break
    grid_b = pl.cdiv(B, bt)
    block_bytes = bt * per_image_bytes

    # VMEM ask: 2x(in)+2x(out) double buffers + params + slack, capped by budget.
    vmem_limit = int(min(vmem_budget,
                         max(32 << 20, 4 * block_bytes + param_bytes + (2 << 20))))

    cost = pl.CostEstimate(
        flops=int(3 * B * C * HW + 4 * B * C * mid),
        transcendentals=int(B * C),
        bytes_accessed=int(2 * B * C * HW * itemsize + param_bytes),
    )

    # NOTE: when B % bt != 0 the trailing block reads don't-care rows beyond B;
    # their attention values are garbage but the out-of-bounds writes are
    # dropped, so the visible output is correct.  Do not read those rows.
    out = pl.pallas_call(
        _make_ca_kernel(1.0 / HW),
        out_shape=jax.ShapeDtypeStruct((B, C, HW), dt),
        grid_spec=pltpu.PrefetchScalarGridSpec(
            num_scalar_prefetch=0,
            grid=(grid_b,),
            in_specs=[
                pl.BlockSpec((bt, C, HW), lambda b: (b, 0, 0)),
                pl.BlockSpec((mid, C), lambda b: (0, 0)),
                pl.BlockSpec((C, mid), lambda b: (0, 0)),
                pl.BlockSpec((1, mid), lambda b: (0, 0)),
                pl.BlockSpec((1, C), lambda b: (0, 0)),
            ],
            out_specs=pl.BlockSpec((bt, C, HW), lambda b: (b, 0, 0)),
        ),
        compiler_params=pltpu.CompilerParams(
            dimension_semantics=("parallel",),
            vmem_limit_bytes=vmem_limit,
        ),
        cost_estimate=cost,
    )(x, w1f, w2f, b1f, b2f)

    return out.reshape(B, C, H, W)


def ca_layer_ref(x, w1, b1, w2, b2):
    # Pure-JAX reference of the PyTorch forward (return_attention=False path).
    xf = x.astype(jnp.float32)
    pooled = jnp.mean(xf, axis=(2, 3))                      # (B, C)
    h = jnp.maximum(pooled @ w1.T + b1, 0.0)                # (B, mid)
    a = jax.nn.sigmoid(h @ w2.T + b2)                       # (B, C)
    return (xf * a[:, :, None, None]).astype(x.dtype)


if __name__ == "__main__":
    # channel=16 -> mid_channel = 16 // 8 = 2
    B, C, H, W = 2, 16, 16, 16
    mid = C // 8

    key = jax.random.PRNGKey(0)
    kx, k1, k2, k3, k4 = jax.random.split(key, 5)
    x = jax.random.normal(kx, (B, C, H, W), dtype=jnp.float32)

    w1 = jax.random.normal(k1, (mid, C), dtype=jnp.float32) * 0.1
    b1 = jax.random.normal(k2, (mid,), dtype=jnp.float32) * 0.1
    w2 = jax.random.normal(k3, (C, mid), dtype=jnp.float32) * 0.1
    b2 = jax.random.normal(k4, (C,), dtype=jnp.float32) * 0.1

    out = jax.block_until_ready(ca_layer(x, w1, b1, w2, b2))
    ref = ca_layer_ref(x, w1, b1, w2, b2)
    assert out.shape == (B, C, H, W)
    assert jnp.allclose(out, ref, atol=1e-5, rtol=1e-5), "mismatch vs reference"

    # Non-128-multiple spatial extent: full-extent HW block, masked tail store,
    # no wrapper pad/slice.
    x2 = jax.random.normal(kx, (4, C, 9, 9), dtype=jnp.float32)
    out2 = jax.block_until_ready(ca_layer(x2, w1, b1, w2, b2))
    ref2 = ca_layer_ref(x2, w1, b1, w2, b2)
    assert jnp.allclose(out2, ref2, atol=1e-5, rtol=1e-5), "mismatch (odd HW)"

    # Ragged batch tiling (B not divisible by bt): OOB rows read, writes dropped.
    x3 = jax.random.normal(kx, (3, C, H, W), dtype=jnp.float32)
    out3 = jax.block_until_ready(ca_layer(x3, w1, b1, w2, b2, _force_bt=2))
    ref3 = ca_layer_ref(x3, w1, b1, w2, b2)
    assert jnp.allclose(out3, ref3, atol=1e-5, rtol=1e-5), "mismatch (ragged batch)"

    # HW-tiled large-image path (forced small tile), including the masked tail.
    x4 = jax.random.normal(kx, (3, C, 17, 17), dtype=jnp.float32)
    out4 = jax.block_until_ready(ca_layer(x4, w1, b1, w2, b2, _force_hw_tile=128))
    ref4 = ca_layer_ref(x4, w1, b1, w2, b2)
    assert jnp.allclose(out4, ref4, atol=1e-5, rtol=1e-5), "mismatch (HW-tiled)"

    print("KERNEL_OK")
</pallas_src>

<mosaic_0001>
module attributes {stable_mosaic.version = 11 : i64} {
  func.func @kernel(%arg0: i32, %arg1: memref<2x16x256xf32, #tpu.memory_space<vmem>>, %arg2: memref<2x16xf32, #tpu.memory_space<vmem>>, %arg3: memref<16x2xf32, #tpu.memory_space<vmem>>, %arg4: memref<1x2xf32, #tpu.memory_space<vmem>>, %arg5: memref<1x16xf32, #tpu.memory_space<vmem>>, %arg6: memref<2x16x256xf32, #tpu.memory_space<vmem>>) attributes {dimension_semantics = [#tpu.dimension_semantics<parallel>], iteration_bounds = array<i64: 1>, scalar_prefetch = 0 : i64, scratch_operands = 0 : i64, tpu.core_type = #tpu.core_type<tc>, window_params = [{transform_indices = @transform_0, window_bounds = array<i64: 2, 16, 256>}, {pipeline_mode = #tpu.pipeline_mode<synchronous>, transform_indices = @transform_1, window_bounds = array<i64: 2, 16>}, {pipeline_mode = #tpu.pipeline_mode<synchronous>, transform_indices = @transform_2, window_bounds = array<i64: 16, 2>}, {pipeline_mode = #tpu.pipeline_mode<synchronous>, transform_indices = @transform_3, window_bounds = array<i64: 1, 2>}, {pipeline_mode = #tpu.pipeline_mode<synchronous>, transform_indices = @transform_4, window_bounds = array<i64: 1, 16>}, {transform_indices = @transform_5, window_bounds = array<i64: 2, 16, 256>}]} {
    %c0 = arith.constant 0 : index
    %c0_0 = arith.constant 0 : index
    %c0_1 = arith.constant 0 : index
    %0 = vector.load %arg1[%c0, %c0_0, %c0_1] : memref<2x16x256xf32, #tpu.memory_space<vmem>>, vector<2x16x256xf32>
    %cst = arith.constant dense<0.000000e+00> : vector<2x16xf32>
    %1 = vector.multi_reduction <add>, %0, %cst [2] : vector<2x16x256xf32> to vector<2x16xf32>
    %cst_2 = arith.constant 3.906250e-03 : f32
    %2 = vector.broadcast %cst_2 : f32 to vector<2x16xf32>
    %3 = arith.mulf %1, %2 : vector<2x16xf32>
    %4 = vector.shape_cast %3 : vector<2x16xf32> to vector<2x1x16xf32>
    %c0_3 = arith.constant 0 : index
    %c0_4 = arith.constant 0 : index
    %5 = vector.load %arg2[%c0_3, %c0_4] : memref<2x16xf32, #tpu.memory_space<vmem>>, vector<2x16xf32>
    %6 = vector.shape_cast %5 : vector<2x16xf32> to vector<1x2x16xf32>
    %7 = vector.broadcast %4 : vector<2x1x16xf32> to vector<2x2x16xf32>
    %8 = vector.broadcast %6 : vector<1x2x16xf32> to vector<2x2x16xf32>
    %9 = arith.mulf %7, %8 : vector<2x2x16xf32>
    %cst_5 = arith.constant dense<0.000000e+00> : vector<2x2xf32>
    %10 = vector.multi_reduction <add>, %9, %cst_5 [2] : vector<2x2x16xf32> to vector<2x2xf32>
    %c0_6 = arith.constant 0 : index
    %c0_7 = arith.constant 0 : index
    %11 = vector.load %arg4[%c0_6, %c0_7] : memref<1x2xf32, #tpu.memory_space<vmem>>, vector<1x2xf32>
    %12 = vector.broadcast %11 : vector<1x2xf32> to vector<2x2xf32>
    %13 = arith.addf %10, %12 : vector<2x2xf32>
    %cst_8 = arith.constant 0.000000e+00 : f32
    %14 = vector.broadcast %cst_8 : f32 to vector<2x2xf32>
    %15 = arith.maximumf %13, %14 : vector<2x2xf32>
    %16 = vector.shape_cast %15 : vector<2x2xf32> to vector<2x1x2xf32>
    %c0_9 = arith.constant 0 : index
    %c0_10 = arith.constant 0 : index
    %17 = vector.load %arg3[%c0_9, %c0_10] : memref<16x2xf32, #tpu.memory_space<vmem>>, vector<16x2xf32>
    %18 = vector.shape_cast %17 : vector<16x2xf32> to vector<1x16x2xf32>
    %19 = vector.broadcast %16 : vector<2x1x2xf32> to vector<2x16x2xf32>
    %20 = vector.broadcast %18 : vector<1x16x2xf32> to vector<2x16x2xf32>
    %21 = arith.mulf %19, %20 : vector<2x16x2xf32>
    %cst_11 = arith.constant dense<0.000000e+00> : vector<2x16xf32>
    %22 = vector.multi_reduction <add>, %21, %cst_11 [2] : vector<2x16x2xf32> to vector<2x16xf32>
    %c0_12 = arith.constant 0 : index
    %c0_13 = arith.constant 0 : index
    %23 = vector.load %arg5[%c0_12, %c0_13] : memref<1x16xf32, #tpu.memory_space<vmem>>, vector<1x16xf32>
    %24 = vector.broadcast %23 : vector<1x16xf32> to vector<2x16xf32>
    %25 = arith.addf %22, %24 : vector<2x16xf32>
    %26 = arith.negf %25 : vector<2x16xf32>
    %27 = math.exp %26 : vector<2x16xf32>
    %cst_14 = arith.constant 1.000000e+00 : f32
    %28 = vector.broadcast %cst_14 : f32 to vector<2x16xf32>
    %29 = arith.addf %28, %27 : vector<2x16xf32>
    %30 = arith.divf %28, %29 : vector<2x16xf32>
    %c0_15 = arith.constant 0 : index
    %c0_16 = arith.constant 0 : index
    %c0_17 = arith.constant 0 : index
    %31 = vector.load %arg1[%c0_15, %c0_16, %c0_17] : memref<2x16x256xf32, #tpu.memory_space<vmem>>, vector<2x16x256xf32>
    %32 = vector.shape_cast %30 : vector<2x16xf32> to vector<2x16x1xf32>
    %33 = vector.broadcast %32 : vector<2x16x1xf32> to vector<2x16x256xf32>
    %34 = arith.mulf %31, %33 : vector<2x16x256xf32>
    %c0_18 = arith.constant 0 : index
    %c0_19 = arith.constant 0 : index
    %c0_20 = arith.constant 0 : index
    %35 = vector.load %arg6[%c0_18, %c0_19, %c0_20] : memref<2x16x256xf32, #tpu.memory_space<vmem>>, vector<2x16x256xf32>
    tpu.vector_store %arg6[%c0_18, %c0_19, %c0_20], %34 {strides = array<i32>} : memref<2x16x256xf32, #tpu.memory_space<vmem>>, vector<2x16x256xf32>,
    return
  }
  func.func @transform_0(%arg0: i32) -> (i32, i32, i32) {
    %c0_i32 = arith.constant 0 : i32
    %c0_i32_0 = arith.constant 0 : i32
    %c0_i32_1 = arith.constant 0 : i32
    return %arg0, %c0_i32, %c0_i32_0 : i32, i32, i32
  }
  func.func @transform_1(%arg0: i32) -> (i32, i32) {
    %c0_i32 = arith.constant 0 : i32
    %c0_i32_0 = arith.constant 0 : i32
    %c0_i32_1 = arith.constant 0 : i32
    return %c0_i32, %c0_i32_0 : i32, i32
  }
  func.func @transform_2(%arg0: i32) -> (i32, i32) {
    %c0_i32 = arith.constant 0 : i32
    %c0_i32_0 = arith.constant 0 : i32
    %c0_i32_1 = arith.constant 0 : i32
    return %c0_i32, %c0_i32_0 : i32, i32
  }
  func.func @transform_3(%arg0: i32) -> (i32, i32) {
    %c0_i32 = arith.constant 0 : i32
    %c0_i32_0 = arith.constant 0 : i32
    %c0_i32_1 = arith.constant 0 : i32
    return %c0_i32, %c0_i32_0 : i32, i32
  }
  func.func @transform_4(%arg0: i32) -> (i32, i32) {
    %c0_i32 = arith.constant 0 : i32
    %c0_i32_0 = arith.constant 0 : i32
    %c0_i32_1 = arith.constant 0 : i32
    return %c0_i32, %c0_i32_0 : i32, i32
  }
  func.func @transform_5(%arg0: i32) -> (i32, i32, i32) {
    %c0_i32 = arith.constant 0 : i32
    %c0_i32_0 = arith.constant 0 : i32
    %c0_i32_1 = arith.constant 0 : i32
    return %arg0, %c0_i32, %c0_i32_0 : i32, i32, i32
  }
}

</mosaic_0001>

<llo_original>
// kernel: tpu_custom_call.1
$region0: #{tpu_custom_call.1}
  #allocation0 [shape = 'u32[]', space=smem, size = 0x4, offset = 0x4, fixed_abs, tag = 'smem constant byte address 0x4 - core index']
  #allocation1 [shape = 'u32[72,128]{1,0:T(1,128)}', space=vmem, size = 0x9000, scoped, tag = 'internal scratch']
  %s0 = inlined_call_operand.hbm [shape: f32[2,16,256], index: 0, kind: input, shape index: {}]
  %s1 = inlined_call_operand.vmem [shape: f32[2,16], index: 1, kind: input, shape index: {}]
  %s2 = inlined_call_operand.vmem [shape: f32[16,2], index: 2, kind: input, shape index: {}]
  %s3 = inlined_call_operand.vmem [shape: f32[1,2], index: 3, kind: input, shape index: {}]
  %s4 = inlined_call_operand.vmem [shape: f32[1,16], index: 4, kind: input, shape index: {}]
  %s5 = inlined_call_operand.hbm [shape: f32[2,16,256], index: 5, kind: output, shape index: {}]
  %s6 = sld [smem:[#allocation0]]
  $region34: #{tpu_custom_call.1} parent=0
    _
  %s8 = ssub.s32 1, %s6
  %s9 = scalar_select 0, %s8, %s6
  $region1: #{tpu_custom_call.1} parent=0
    #allocation2 [shape = 'u8[32768]{0}', space=vmem, size = 0x8000, scoped, tag = 'input window, operand 0, single buffered']
    #allocation3 [shape = 's32[1]{0}', space=sflag, size = 0x4, scoped, tag = 'scoped memory for tpu_custom_call.1']
    #allocation4 [shape = 's32[1]{0}', space=sflag, size = 0x4, scoped, tag = 'scoped memory for tpu_custom_call.1']
    #allocation5 [shape = 'u8[32768]{0}', space=vmem, size = 0x8000, scoped, tag = 'output window, operand 0, single buffered']
    %10 = vsyncpa [#allocation3], 0
    %11 = vsyncpa [#allocation4], 0
    // Predicated region
    $region2: #{tpu_custom_call.1} parent=1 // pred_check
      _
    $region3: #{tpu_custom_call.1} parent=1 // pred_check_branch
      %13 = sbr.rel (0) target = $region5
    $region4: #{tpu_custom_call.1} parent=1 // pred_region
      %15 = vsyncadd [#allocation3], 0
      %s16 = sshll.u32 %s0, 4
      %s17 = int_to_ptr.hbm [resolvable:$true] %s16
      %s18 = sshll.u32 [#allocation2], 4
      %s19 = int_to_ptr.vmem [resolvable:$true] %s18
      %24 = dma.hbm_to_vmem [thread:$0]  %s17, 1024, %s19, [#allocation3], 256, 256, 16
    $region5: #{tpu_custom_call.1} parent=1 // pred_fallthru
      _
    // Predicated region
    $region6: #{tpu_custom_call.1} parent=1 // pred_check
      _
    $region7: #{tpu_custom_call.1} parent=1 // pred_check_branch
      %26 = sbr.rel (0) target = $region9
    $region8: #{tpu_custom_call.1} parent=1 // pred_region
      _
    $region9: #{tpu_custom_call.1} parent=1 // pred_fallthru
      _
    // Predicated region
    $region10: #{tpu_custom_call.1} parent=1 // pred_check
      _
    $region11: #{tpu_custom_call.1} parent=1 // pred_check_branch
      %28 = sbr.rel (0) target = $region13
    $region12: #{tpu_custom_call.1} parent=1 // pred_region
      _
    $region13: #{tpu_custom_call.1} parent=1 // pred_fallthru
      _
    // Predicated region
    $region14: #{tpu_custom_call.1} parent=1 // pred_check
      _
    $region15: #{tpu_custom_call.1} parent=1 // pred_check_branch
      %30 = sbr.rel (0) target = $region17
    $region16: #{tpu_custom_call.1} parent=1 // pred_region
      _
    $region17: #{tpu_custom_call.1} parent=1 // pred_fallthru
      _
    // Predicated region
    $region18: #{tpu_custom_call.1} parent=1 // pred_check
      _
    $region19: #{tpu_custom_call.1} parent=1 // pred_check_branch
      %32 = sbr.rel (0) target = $region21
    $region20: #{tpu_custom_call.1} parent=1 // pred_region
      _
    $region21: #{tpu_custom_call.1} parent=1 // pred_fallthru
      _
    // Predicated region
    $region22: #{tpu_custom_call.1} parent=1 // pred_check
      _
    $region23: #{tpu_custom_call.1} parent=1 // pred_check_branch
      %34 = sbr.rel (0) target = $region25
    $region24: #{tpu_custom_call.1} parent=1 // pred_region
      %36 = dma.done [#allocation3], 1024
    $region25: #{tpu_custom_call.1} parent=1 // pred_fallthru
      _
    %v37 = vld [vmem:[#allocation2] sm:$0xff]
    %v38 = vld [vmem:[#allocation2 + $0x8] sm:$0xff]
    %v39 = vld [vmem:[#allocation2 + $0x10] sm:$0xff]
    %v40 = vld [vmem:[#allocation2 + $0x18] sm:$0xff]
    %v41 = vld [vmem:[#allocation2 + $0x20] sm:$0xff]
    %v42 = vld [vmem:[#allocation2 + $0x28] sm:$0xff]
    %v43 = vld [vmem:[#allocation2 + $0x30] sm:$0xff]
    %v44 = vld [vmem:[#allocation2 + $0x38] sm:$0xff]
    %v45 = vadd.f32 %v37, %v38
    %46 = vadd.xlane.f32.xlu0 %v45
    %v47 = vpop.xlane.xlu0 %46
    %v48 = vadd.f32 %v39, %v40
    %49 = vadd.xlane.f32.xlu0 %v48
    %v50 = vpop.xlane.xlu0 %49
    %v51 = vadd.f32 %v41, %v42
    %52 = vadd.xlane.f32.xlu0 %v51
    %v53 = vpop.xlane.xlu0 %52
    %v54 = vadd.f32 %v43, %v44
    %55 = vadd.xlane.f32.xlu0 %v54
    %v56 = vpop.xlane.xlu0 %55
    %v57 = vmul.f32 %v47, 0.00390625
    %v58 = vmul.f32 %v50, 0.00390625
    %v59 = vmul.f32 %v53, 0.00390625
    %v60 = vmul.f32 %v56, 0.00390625
    %v61 = vld [vmem:[%s1] sm:$0x3]
    %v63 = vperm.slane %v61, 0
    %v64 = vlaneseq
    %v65 = vshrl.u32 %v64, 7
    %67 = vset.pattern.permute.xlu0 %v65
    %68 = vperm.xlu0 %67, %v63
    %v69 = vpop.permute.xlu0 %68
    %v70 = vlaneseq
    %v71 = vshrl.u32 %v70, 7
    %v72 = vadd.s32 %v71, 8
    %73 = vset.pattern.permute.xlu0 %v72
    %74 = vperm.xlu0 %73, %v63
    %v75 = vpop.permute.xlu0 %74
    %v76 = vperm.slane %v61, 1
    %v77 = vlaneseq
    %v78 = vshrl.u32 %v77, 7
    %80 = vset.pattern.permute.xlu0 %v78
    %81 = vperm.xlu0 %80, %v76
    %v82 = vpop.permute.xlu0 %81
    %v83 = vlaneseq
    %v84 = vshrl.u32 %v83, 7
    %v85 = vadd.s32 %v84, 8
    %86 = vset.pattern.permute.xlu0 %v85
    %87 = vperm.xlu0 %86, %v76
    %v88 = vpop.permute.xlu0 %87
    %v93 = vmul.f32 %v57, %v69
    %v94 = vmul.f32 %v58, %v75
    %v95 = vmul.f32 %v57, %v82
    %v96 = vmul.f32 %v58, %v88
    %v97 = vmul.f32 %v59, %v69
    %v98 = vmul.f32 %v60, %v75
    %v99 = vmul.f32 %v59, %v82
    %v100 = vmul.f32 %v60, %v88
    %109 = vset.pattern.permute.xlu0 0
    %110 = vperm.xlu0 %109, %v93
    %v111 = vpop.permute.xlu0 %110
    %112 = vset.pattern.permute.xlu0 0
    %113 = vperm.xlu0 %112, %v94
    %v114 = vpop.permute.xlu0 %113
    %115 = vset.pattern.permute.xlu0 0
    %116 = vperm.xlu0 %115, %v95
    %v117 = vpop.permute.xlu0 %116
    %118 = vset.pattern.permute.xlu0 0
    %119 = vperm.xlu0 %118, %v96
    %v120 = vpop.permute.xlu0 %119
    %121 = vset.pattern.permute.xlu0 0
    %122 = vperm.xlu0 %121, %v97
    %v123 = vpop.permute.xlu0 %122
    %124 = vset.pattern.permute.xlu0 0
    %125 = vperm.xlu0 %124, %v98
    %v126 = vpop.permute.xlu0 %125
    %127 = vset.pattern.permute.xlu0 0
    %128 = vperm.xlu0 %127, %v99
    %v129 = vpop.permute.xlu0 %128
    %130 = vset.pattern.permute.xlu0 0
    %131 = vperm.xlu0 %130, %v100
    %v132 = vpop.permute.xlu0 %131
    %v133 = vlaneseq
    %v134 = vand.u32 %v133, 127
    %v135 = vperm.slane %v111, %v134
    %v136 = vadd.s32 %v134, 4294967288
    %v137 = vperm.slane %v114, %v136
    %vm138 = vcmask 130112
    %v139 = vsel %vm138, %v137, %v135
    %v140 = vperm.slane %v117, %v134
    %v141 = vperm.slane %v120, %v136
    %v142 = vsel %vm138, %v141, %v140
    %v143 = vperm.slane %v123, %v134
    %v144 = vperm.slane %v126, %v136
    %v145 = vsel %vm138, %v144, %v143
    %v146 = vperm.slane %v129, %v134
    %v147 = vperm.slane %v132, %v136
    %v148 = vsel %vm138, %v147, %v146
    %vm149 = vcmask 1041409
    %v150 = vsel %vm149, %v142, %v139
    %v151 = vsel %vm149, %v148, %v145
    %vm154 = vcmask 123904
    %v155 = vsel %vm154, %v150, 0.0
    %156 = vadd.xlane.f32.xlu0 %v155
    %v157 = vpop.xlane.xlu0 %156
    %v158 = vsel %vm154, %v151, 0.0
    %159 = vadd.xlane.f32.xlu0 %v158
    %v160 = vpop.xlane.xlu0 %159
    %v161 = vld [vmem:[%s3] sm:$0x1]
    %v163 = vperm.slane %v161, 0
    %v164 = vlaneseq
    %v165 = vshrl.u32 %v164, 7
    %167 = vset.pattern.permute.xlu0 %v165
    %168 = vperm.xlu0 %167, %v163
    %v169 = vpop.permute.xlu0 %168
    %v171 = vadd.f32 %v157, %v169
    %v172 = vadd.f32 %v160, %v169
    %v173 = vmax.f32 %v171, 0.0
    %v174 = vmax.f32 %v172, 0.0
    %v175 = vld [vmem:[%s2] sm:$0xff]
    %v176 = vld [vmem:[%s2 + $0x8] sm:$0xff]
    %v179 = vperm.slane %v175, 0
    %v180 = vlaneseq
    %v181 = vshrl.u32 %v180, 7
    %183 = vset.pattern.permute.xlu0 %v181
    %184 = vperm.xlu0 %183, %v179
    %v185 = vpop.permute.xlu0 %184
    %v186 = vperm.slane %v175, 1
    %v187 = vlaneseq
    %v188 = vshrl.u32 %v187, 7
    %190 = vset.pattern.permute.xlu0 %v188
    %191 = vperm.xlu0 %190, %v186
    %v192 = vpop.permute.xlu0 %191
    %v193 = vperm.slane %v175, 2
    %v194 = vlaneseq
    %v195 = vshrl.u32 %v194, 7
    %197 = vset.pattern.permute.xlu0 %v195
    %198 = vperm.xlu0 %197, %v193
    %v199 = vpop.permute.xlu0 %198
    %v200 = vperm.slane %v175, 3
    %v201 = vlaneseq
    %v202 = vshrl.u32 %v201, 7
    %204 = vset.pattern.permute.xlu0 %v202
    %205 = vperm.xlu0 %204, %v200
    %v206 = vpop.permute.xlu0 %205
    %v207 = vperm.slane %v175, 4
    %v208 = vlaneseq
    %v209 = vshrl.u32 %v208, 7
    %211 = vset.pattern.permute.xlu0 %v209
    %212 = vperm.xlu0 %211, %v207
    %v213 = vpop.permute.xlu0 %212
    %v214 = vperm.slane %v175, 5
    %v215 = vlaneseq
    %v216 = vshrl.u32 %v215, 7
    %218 = vset.pattern.permute.xlu0 %v216
    %219 = vperm.xlu0 %218, %v214
    %v220 = vpop.permute.xlu0 %219
    %v221 = vperm.slane %v175, 6
    %v222 = vlaneseq
    %v223 = vshrl.u32 %v222, 7
    %225 = vset.pattern.permute.xlu0 %v223
    %226 = vperm.xlu0 %225, %v221
    %v227 = vpop.permute.xlu0 %226
    %v228 = vperm.slane %v175, 7
    %v229 = vlaneseq
    %v230 = vshrl.u32 %v229, 7
    %232 = vset.pattern.permute.xlu0 %v230
    %233 = vperm.xlu0 %232, %v228
    %v234 = vpop.permute.xlu0 %233
    %v235 = vperm.slane %v176, 0
    %v236 = vlaneseq
    %v237 = vshrl.u32 %v236, 7
    %239 = vset.pattern.permute.xlu0 %v237
    %240 = vperm.xlu0 %239, %v235
    %v241 = vpop.permute.xlu0 %240
    %v242 = vperm.slane %v176, 1
    %v243 = vlaneseq
    %v244 = vshrl.u32 %v243, 7
    %246 = vset.pattern.permute.xlu0 %v244
    %247 = vperm.xlu0 %246, %v242
    %v248 = vpop.permute.xlu0 %247
    %v249 = vperm.slane %v176, 2
    %v250 = vlaneseq
    %v251 = vshrl.u32 %v250, 7
    %253 = vset.pattern.permute.xlu0 %v251
    %254 = vperm.xlu0 %253, %v249
    %v255 = vpop.permute.xlu0 %254
    %v256 = vperm.slane %v176, 3
    %v257 = vlaneseq
    %v258 = vshrl.u32 %v257, 7
    %260 = vset.pattern.permute.xlu0 %v258
    %261 = vperm.xlu0 %260, %v256
    %v262 = vpop.permute.xlu0 %261
    %v263 = vperm.slane %v176, 4
    %v264 = vlaneseq
    %v265 = vshrl.u32 %v264, 7
    %267 = vset.pattern.permute.xlu0 %v265
    %268 = vperm.xlu0 %267, %v263
    %v269 = vpop.permute.xlu0 %268
    %v270 = vperm.slane %v176, 5
    %v271 = vlaneseq
    %v272 = vshrl.u32 %v271, 7
    %274 = vset.pattern.permute.xlu0 %v272
    %275 = vperm.xlu0 %274, %v270
    %v276 = vpop.permute.xlu0 %275
    %v277 = vperm.slane %v176, 6
    %v278 = vlaneseq
    %v279 = vshrl.u32 %v278, 7
    %281 = vset.pattern.permute.xlu0 %v279
    %282 = vperm.xlu0 %281, %v277
    %v283 = vpop.permute.xlu0 %282
    %v284 = vperm.slane %v176, 7
    %v285 = vlaneseq
    %v286 = vshrl.u32 %v285, 7
    %288 = vset.pattern.permute.xlu0 %v286
    %289 = vperm.xlu0 %288, %v284
    %v290 = vpop.permute.xlu0 %289
    %v307 = vmul.f32 %v173, %v185
    %v308 = vmul.f32 %v173, %v192
    %v309 = vmul.f32 %v173, %v199
    %v310 = vmul.f32 %v173, %v206
    %v311 = vmul.f32 %v173, %v213
    %v312 = vmul.f32 %v173, %v220
    %v313 = vmul.f32 %v173, %v227
    %v314 = vmul.f32 %v173, %v234
    %v315 = vmul.f32 %v173, %v241
    %v316 = vmul.f32 %v173, %v248
    %v317 = vmul.f32 %v173, %v255
    %v318 = vmul.f32 %v173, %v262
    %v319 = vmul.f32 %v173, %v269
    %v320 = vmul.f32 %v173, %v276
    %v321 = vmul.f32 %v173, %v283
    %v322 = vmul.f32 %v173, %v290
    %v323 = vmul.f32 %v174, %v185
    %v324 = vmul.f32 %v174, %v192
    %v325 = vmul.f32 %v174, %v199
    %v326 = vmul.f32 %v174, %v206
    %v327 = vmul.f32 %v174, %v213
    %v328 = vmul.f32 %v174, %v220
    %v329 = vmul.f32 %v174, %v227
    %v330 = vmul.f32 %v174, %v234
    %v331 = vmul.f32 %v174, %v241
    %v332 = vmul.f32 %v174, %v248
    %v333 = vmul.f32 %v174, %v255
    %v334 = vmul.f32 %v174, %v262
    %v335 = vmul.f32 %v174, %v269
    %v336 = vmul.f32 %v174, %v276
    %v337 = vmul.f32 %v174, %v283
    %v338 = vmul.f32 %v174, %v290
    %371 = vset.pattern.permute.xlu0 0
    %372 = vperm.xlu0 %371, %v307
    %v373 = vpop.permute.xlu0 %372
    %374 = vset.pattern.permute.xlu0 0
    %375 = vperm.xlu0 %374, %v308
    %v376 = vpop.permute.xlu0 %375
    %377 = vset.pattern.permute.xlu0 0
    %378 = vperm.xlu0 %377, %v309
    %v379 = vpop.permute.xlu0 %378
    %380 = vset.pattern.permute.xlu0 0
    %381 = vperm.xlu0 %380, %v310
    %v382 = vpop.permute.xlu0 %381
    %383 = vset.pattern.permute.xlu0 0
    %384 = vperm.xlu0 %383, %v311
    %v385 = vpop.permute.xlu0 %384
    %386 = vset.pattern.permute.xlu0 0
    %387 = vperm.xlu0 %386, %v312
    %v388 = vpop.permute.xlu0 %387
    %389 = vset.pattern.permute.xlu0 0
    %390 = vperm.xlu0 %389, %v313
    %v391 = vpop.permute.xlu0 %390
    %392 = vset.pattern.permute.xlu0 0
    %393 = vperm.xlu0 %392, %v314
    %v394 = vpop.permute.xlu0 %393
    %395 = vset.pattern.permute.xlu0 0
    %396 = vperm.xlu0 %395, %v315
    %v397 = vpop.permute.xlu0 %396
    %398 = vset.pattern.permute.xlu0 0
    %399 = vperm.xlu0 %398, %v316
    %v400 = vpop.permute.xlu0 %399
    %401 = vset.pattern.permute.xlu0 0
    %402 = vperm.xlu0 %401, %v317
    %v403 = vpop.permute.xlu0 %402
    %404 = vset.pattern.permute.xlu0 0
    %405 = vperm.xlu0 %404, %v318
    %v406 = vpop.permute.xlu0 %405
    %407 = vset.pattern.permute.xlu0 0
    %408 = vperm.xlu0 %407, %v319
    %v409 = vpop.permute.xlu0 %408
    %410 = vset.pattern.permute.xlu0 0
    %411 = vperm.xlu0 %410, %v320
    %v412 = vpop.permute.xlu0 %411
    %413 = vset.pattern.permute.xlu0 0
    %414 = vperm.xlu0 %413, %v321
    %v415 = vpop.permute.xlu0 %414
    %416 = vset.pattern.permute.xlu0 0
    %417 = vperm.xlu0 %416, %v322
    %v418 = vpop.permute.xlu0 %417
    %419 = vset.pattern.permute.xlu0 0
    %420 = vperm.xlu0 %419, %v323
    %v421 = vpop.permute.xlu0 %420
    %422 = vset.pattern.permute.xlu0 0
    %423 = vperm.xlu0 %422, %v324
    %v424 = vpop.permute.xlu0 %423
    %425 = vset.pattern.permute.xlu0 0
    %426 = vperm.xlu0 %425, %v325
    %v427 = vpop.permute.xlu0 %426
    %428 = vset.pattern.permute.xlu0 0
    %429 = vperm.xlu0 %428, %v326
    %v430 = vpop.permute.xlu0 %429
    %431 = vset.pattern.permute.xlu0 0
    %432 = vperm.xlu0 %431, %v327
    %v433 = vpop.permute.xlu0 %432
    %434 = vset.pattern.permute.xlu0 0
    %435 = vperm.xlu0 %434, %v328
    %v436 = vpop.permute.xlu0 %435
    %437 = vset.pattern.permute.xlu0 0
    %438 = vperm.xlu0 %437, %v329
    %v439 = vpop.permute.xlu0 %438
    %440 = vset.pattern.permute.xlu0 0
    %441 = vperm.xlu0 %440, %v330
    %v442 = vpop.permute.xlu0 %441
    %443 = vset.pattern.permute.xlu0 0
    %444 = vperm.xlu0 %443, %v331
    %v445 = vpop.permute.xlu0 %444
    %446 = vset.pattern.permute.xlu0 0
    %447 = vperm.xlu0 %446, %v332
    %v448 = vpop.permute.xlu0 %447
    %449 = vset.pattern.permute.xlu0 0
    %450 = vperm.xlu0 %449, %v333
    %v451 = vpop.permute.xlu0 %450
    %452 = vset.pattern.permute.xlu0 0
    %453 = vperm.xlu0 %452, %v334
    %v454 = vpop.permute.xlu0 %453
    %455 = vset.pattern.permute.xlu0 0
    %456 = vperm.xlu0 %455, %v335
    %v457 = vpop.permute.xlu0 %456
    %458 = vset.pattern.permute.xlu0 0
    %459 = vperm.xlu0 %458, %v336
    %v460 = vpop.permute.xlu0 %459
    %461 = vset.pattern.permute.xlu0 0
    %462 = vperm.xlu0 %461, %v337
    %v463 = vpop.permute.xlu0 %462
    %464 = vset.pattern.permute.xlu0 0
    %465 = vperm.xlu0 %464, %v338
    %v466 = vpop.permute.xlu0 %465
    %v467 = vperm.slane %v373, %v134
    %v468 = vperm.slane %v376, %v134
    %v469 = vperm.slane %v379, %v134
    %v470 = vperm.slane %v382, %v134
    %v471 = vperm.slane %v385, %v134
    %v472 = vperm.slane %v388, %v134
    %v473 = vperm.slane %v391, %v134
    %v474 = vperm.slane %v394, %v134
    %v475 = vperm.slane %v397, %v134
    %v476 = vperm.slane %v400, %v134
    %v477 = vperm.slane %v403, %v134
    %v478 = vperm.slane %v406, %v134
    %v479 = vperm.slane %v409, %v134
    %v480 = vperm.slane %v412, %v134
    %v481 = vperm.slane %v415, %v134
    %v482 = vperm.slane %v418, %v134
    %v483 = vperm.slane %v421, %v134
    %v484 = vperm.slane %v424, %v134
    %v485 = vperm.slane %v427, %v134
    %v486 = vperm.slane %v430, %v134
    %v487 = vperm.slane %v433, %v134
    %v488 = vperm.slane %v436, %v134
    %v489 = vperm.slane %v439, %v134
    %v490 = vperm.slane %v442, %v134
    %v491 = vperm.slane %v445, %v134
    %v492 = vperm.slane %v448, %v134
    %v493 = vperm.slane %v451, %v134
    %v494 = vperm.slane %v454, %v134
    %v495 = vperm.slane %v457, %v134
    %v496 = vperm.slane %v460, %v134
    %v497 = vperm.slane %v463, %v134
    %v498 = vperm.slane %v466, %v134
    %v499 = vsel %vm149, %v468, %v467
    %vm500 = vcmask 1042434
    %v501 = vsel %vm500, %v469, %v499
    %vm502 = vcmask 1043459
    %v503 = vsel %vm502, %v470, %v501
    %vm504 = vcmask 1044484
    %v505 = vsel %vm504, %v471, %v503
    %vm506 = vcmask 1045509
    %v507 = vsel %vm506, %v472, %v505
    %vm508 = vcmask 1046534
    %v509 = vsel %vm508, %v473, %v507
    %vm510 = vcmask 1047559
    %v511 = vsel %vm510, %v474, %v509
    %v512 = vsel %vm149, %v476, %v475
    %v513 = vsel %vm500, %v477, %v512
    %v514 = vsel %vm502, %v478, %v513
    %v515 = vsel %vm504, %v479, %v514
    %v516 = vsel %vm506, %v480, %v515
    %v517 = vsel %vm508, %v481, %v516
    %v518 = vsel %vm510, %v482, %v517
    %v519 = vsel %vm149, %v484, %v483
    %v520 = vsel %vm500, %v485, %v519
    %v521 = vsel %vm502, %v486, %v520
    %v522 = vsel %vm504, %v487, %v521
    %v523 = vsel %vm506, %v488, %v522
    %v524 = vsel %vm508, %v489, %v523
    %v525 = vsel %vm510, %v490, %v524
    %v526 = vsel %vm149, %v492, %v491
    %v527 = vsel %vm500, %v493, %v526
    %v528 = vsel %vm502, %v494, %v527
    %v529 = vsel %vm504, %v495, %v528
    %v530 = vsel %vm506, %v496, %v529
    %v531 = vsel %vm508, %v497, %v530
    %v532 = vsel %vm510, %v498, %v531
    %vm537 = vcmask 15360
    %v538 = vsel %vm537, %v511, 0.0
    %539 = vadd.xlane.f32.xlu0 %v538
    %v540 = vpop.xlane.xlu0 %539
    %v541 = vsel %vm537, %v518, 0.0
    %542 = vadd.xlane.f32.xlu0 %v541
    %v543 = vpop.xlane.xlu0 %542
    %v544 = vsel %vm537, %v525, 0.0
    %545 = vadd.xlane.f32.xlu0 %v544
    %v546 = vpop.xlane.xlu0 %545
    %v547 = vsel %vm537, %v532, 0.0
    %548 = vadd.xlane.f32.xlu0 %v547
    %v549 = vpop.xlane.xlu0 %548
    %v550 = vld [vmem:[%s4] sm:$0x1]
    %v552 = vperm.slane %v550, 0
    %v553 = vlaneseq
    %v554 = vshrl.u32 %v553, 7
    %556 = vset.pattern.permute.xlu0 %v554
    %557 = vperm.xlu0 %556, %v552
    %v558 = vpop.permute.xlu0 %557
    %v559 = vlaneseq
    %v560 = vshrl.u32 %v559, 7
    %v561 = vadd.s32 %v560, 8
    %562 = vset.pattern.permute.xlu0 %v561
    %563 = vperm.xlu0 %562, %v552
    %v564 = vpop.permute.xlu0 %563
    %v567 = vadd.f32 %v540, %v558
    %v568 = vadd.f32 %v543, %v564
    %v569 = vadd.f32 %v546, %v558
    %v570 = vadd.f32 %v549, %v564
    %v571 = vxor.u32 %v567, 2147483648
    %v572 = vxor.u32 %v568, 2147483648
    %v573 = vxor.u32 %v569, 2147483648
    %v574 = vxor.u32 %v570, 2147483648
    %v575 = vmul.f32 %v571, 1.442695
    %v576 = vpow.pop %v575
    %v577 = vmul.f32 %v572, 1.442695
    %v578 = vpow.pop %v577
    %v579 = vmul.f32 %v573, 1.442695
    %v580 = vpow.pop %v579
    %v581 = vmul.f32 %v574, 1.442695
    %v582 = vpow.pop %v581
    %v583 = vadd.f32 %v576, 1.0
    %v584 = vadd.f32 %v578, 1.0
    %v585 = vadd.f32 %v580, 1.0
    %v586 = vadd.f32 %v582, 1.0
    %v587 = vrcp.pop %v583
    %v588 = vmul.f32 %v583, %v587
    %v589 = vsub.f32 1.0, %v588
    %v590 = vmul.f32 %v587, %v589
    %v591 = vadd.f32 %v587, %v590
    %vm592 = vweird.f32 %v583
    %vm593 = vweird.f32 %v587
    %vm594 = vmor %vm592, %vm593
    %v595 = vsel %vm594, %v587, %v591
    %v596 = vand.u32 2147483647, %v583
    %vm597 = vcmp.eq.f32.partialorder %v596, 8.507059e+37
    %v598 = vand.u32 %v583, 2147483648
    %v599 = vor.u32 1.1754944e-38, %v598
    %v600 = vsel %vm597, %v599, %v595
    %v601 = vmul.f32 1.0, %v600
    %v602 = vrcp.pop %v584
    %v603 = vmul.f32 %v584, %v602
    %v604 = vsub.f32 1.0, %v603
    %v605 = vmul.f32 %v602, %v604
    %v606 = vadd.f32 %v602, %v605
    %vm607 = vweird.f32 %v584
    %vm608 = vweird.f32 %v602
    %vm609 = vmor %vm607, %vm608
    %v610 = vsel %vm609, %v602, %v606
    %v611 = vand.u32 2147483647, %v584
    %vm612 = vcmp.eq.f32.partialorder %v611, 8.507059e+37
    %v613 = vand.u32 %v584, 2147483648
    %v614 = vor.u32 1.1754944e-38, %v613
    %v615 = vsel %vm612, %v614, %v610
    %v616 = vmul.f32 1.0, %v615
    %v617 = vrcp.pop %v585
    %v618 = vmul.f32 %v585, %v617
    %v619 = vsub.f32 1.0, %v618
    %v620 = vmul.f32 %v617, %v619
    %v621 = vadd.f32 %v617, %v620
    %vm622 = vweird.f32 %v585
    %vm623 = vweird.f32 %v617
    %vm624 = vmor %vm622, %vm623
    %v625 = vsel %vm624, %v617, %v621
    %v626 = vand.u32 2147483647, %v585
    %vm627 = vcmp.eq.f32.partialorder %v626, 8.507059e+37
    %v628 = vand.u32 %v585, 2147483648
    %v629 = vor.u32 1.1754944e-38, %v628
    %v630 = vsel %vm627, %v629, %v625
    %v631 = vmul.f32 1.0, %v630
    %v632 = vrcp.pop %v586
    %v633 = vmul.f32 %v586, %v632
    %v634 = vsub.f32 1.0, %v633
    %v635 = vmul.f32 %v632, %v634
    %v636 = vadd.f32 %v632, %v635
    %vm637 = vweird.f32 %v586
    %vm638 = vweird.f32 %v632
    %vm639 = vmor %vm637, %vm638
    %v640 = vsel %vm639, %v632, %v636
    %v641 = vand.u32 2147483647, %v586
    %vm642 = vcmp.eq.f32.partialorder %v641, 8.507059e+37
    %v643 = vand.u32 %v586, 2147483648
    %v644 = vor.u32 1.1754944e-38, %v643
    %v645 = vsel %vm642, %v644, %v640
    %v646 = vmul.f32 1.0, %v645
    %648 = vset.pattern.permute.xlu0 0
    %649 = vperm.xlu0 %648, %v601
    %v650 = vpop.permute.xlu0 %649
    %653 = vset.pattern.permute.xlu0 0
    %654 = vperm.xlu0 %653, %v616
    %v655 = vpop.permute.xlu0 %654
    %658 = vset.pattern.permute.xlu0 0
    %659 = vperm.xlu0 %658, %v631
    %v660 = vpop.permute.xlu0 %659
    %663 = vset.pattern.permute.xlu0 0
    %664 = vperm.xlu0 %663, %v646
    %v665 = vpop.permute.xlu0 %664
    %v667 = vmul.f32 %v37, %v650
    %v668 = vmul.f32 %v38, %v650
    %v669 = vmul.f32 %v39, %v655
    %v670 = vmul.f32 %v40, %v655
    %v671 = vmul.f32 %v41, %v660
    %v672 = vmul.f32 %v42, %v660
    %v673 = vmul.f32 %v43, %v665
    %v674 = vmul.f32 %v44, %v665
    %675 = vst [vmem:[#allocation5] sm:$0xff] %v667
    %676 = vst [vmem:[#allocation5 + $0x8] sm:$0xff] %v668
    %677 = vst [vmem:[#allocation5 + $0x10] sm:$0xff] %v669
    %678 = vst [vmem:[#allocation5 + $0x18] sm:$0xff] %v670
    %679 = vst [vmem:[#allocation5 + $0x20] sm:$0xff] %v671
    %680 = vst [vmem:[#allocation5 + $0x28] sm:$0xff] %v672
    %681 = vst [vmem:[#allocation5 + $0x30] sm:$0xff] %v673
    %682 = vst [vmem:[#allocation5 + $0x38] sm:$0xff] %v674
    // Predicated region
    $region26: #{tpu_custom_call.1} parent=1 // pred_check
      _
    $region27: #{tpu_custom_call.1} parent=1 // pred_check_branch
      %684 = sbr.rel (0) target = $region29
    $region28: #{tpu_custom_call.1} parent=1 // pred_region
      %686 = vsyncadd [#allocation4], 0
      %s687 = sshll.u32 [#allocation5], 4
      %s688 = int_to_ptr.vmem [resolvable:$true] %s687
      %s689 = sshll.u32 %s5, 4
      %s690 = int_to_ptr.hbm [resolvable:$true] %s689
      %695 = dma.vmem_to_hbm [thread:$0]  %s688, 1024, %s690, [#allocation4], 256, 256, 16
    $region29: #{tpu_custom_call.1} parent=1 // pred_fallthru
      _
    // Predicated region
    $region30: #{tpu_custom_call.1} parent=1 // pred_check
      _
    $region31: #{tpu_custom_call.1} parent=1 // pred_check_branch
      %697 = sbr.rel (0) target = $region33
    $region32: #{tpu_custom_call.1} parent=1 // pred_region
      %699 = dma.done [#allocation4], 1024
    $region33: #{tpu_custom_call.1} parent=1 // pred_fallthru
      _
    %700 = vsyncpa [#allocation3], 1
    %701 = vsyncpa [#allocation4], 1

</llo_original>
